<compile_context>
chip_gen: v6e
topology: v6e:2x2x1
jax: 0.10.0
libtpu: 0.0.40
codegen_flags: <defaults>
</compile_context>

<pallas_src>
import functools

import jax
import jax.numpy as jnp
from jax.experimental import pallas as pl
from jax.experimental.pallas import tpu as pltpu


def _round_up(x, m):
    return ((x + m - 1) // m) * m


def _cdiv(a, b):
    return (a + b - 1) // b


def _mixnet_kernel(s_ref, fwT_ref, fb_ref, headT_ref, headb_ref, out_ref, *,
                   num_agent, out_pad):
    # s: (TILE_B, A*S), fwT: (A*S, H), fb: (1, H)
    # headT: (H, out_pad) = [w_v.T | b_v.T | zeros], headb: (1, out_pad)
    s = s_ref[...]

    # Hidden layer: relu(states @ f_v.W^T + f_v.b)   (weights pre-transposed)
    h = jnp.maximum(
        jnp.dot(s, fwT_ref[...], preferred_element_type=jnp.float32) + fb_ref[...],
        0.0)

    # Fused heads: one MXU matmul producing [w_0..w_{A-1}, b, 0, ..., 0]
    y = jnp.dot(h, headT_ref[...], preferred_element_type=jnp.float32) + headb_ref[...]

    # abs() applies only to the w columns (first `num_agent` lanes).
    # Mask built once at (1, out_pad) and broadcast -> negligible VALU work.
    col = jax.lax.broadcasted_iota(jnp.int32, (1, out_pad), dimension=1)
    out_ref[...] = jnp.where(col < num_agent, jnp.abs(y), y)


def _choose_tile_b(B, tile_b):
    # Biggest tile up to tile_b (multiple of 8 sublanes), but never larger than
    # the (rounded-up) batch and capped so the grid keeps ~8 steps when B is
    # large enough — keeps both v7x TensorCores busy and the pipeline overlapped.
    cap_by_batch = _round_up(max(B, 1), 8)
    cap_by_steps = _round_up(_cdiv(max(B, 1), 8), 8)
    tb = min(_round_up(max(tile_b, 8), 8), cap_by_batch, cap_by_steps)
    return max(tb, 8)


def mixnet_forward(states, params, *, tile_b=4096):
    """states: (B, A, S) float32. Returns (|w|: (B, A, 1), b: (B, 1, 1))."""
    B, A, S = states.shape
    fw, fb = params["f_v_w"], params["f_v_b"]   # (H, A*S), (H,)
    ww, wb = params["w_v_w"], params["w_v_b"]   # (A, H),   (A,)
    bw, bb = params["b_v_w"], params["b_v_b"]   # (1, H),   (1,)
    H = fw.shape[0]
    K = A * S

    # Packed output width: A+1 real columns, padded to a multiple of 8 lanes.
    out_pad = max(_round_up(A + 1, 8), 8)

    # torch.cat([states[:, j, :] for j], dim=-1) == row-major reshape (no copy).
    states_flat = states.reshape(B, K).astype(jnp.float32)

    # Pre-transposed first-stage weights (one-time wrapper work).
    fwT = fw.T                                      # (K, H)
    fb2 = fb.reshape(1, H)

    # Fuse the two heads into one lane-packed RHS.
    head_w = jnp.concatenate([ww, bw], axis=0)      # (A+1, H)
    head_b = jnp.concatenate([wb, bb], axis=0)      # (A+1,)
    headT = jnp.zeros((H, out_pad), jnp.float32).at[:, :A + 1].set(head_w.T)
    headb = jnp.zeros((1, out_pad), jnp.float32).at[:, :A + 1].set(
        head_b.reshape(1, A + 1))

    tb = _choose_tile_b(B, tile_b)
    grid = (_cdiv(B, tb),)   # no jnp.pad: ragged last block handled by Pallas

    kernel = functools.partial(_mixnet_kernel, num_agent=A, out_pad=out_pad)

    out = pl.pallas_call(
        kernel,
        out_shape=jax.ShapeDtypeStruct((B, out_pad), jnp.float32),
        grid=grid,
        in_specs=[
            pl.BlockSpec((tb, K), lambda i: (i, 0)),          # states tile
            pl.BlockSpec((K, H), lambda i: (0, 0)),           # f_v.W^T (replicated)
            pl.BlockSpec((1, H), lambda i: (0, 0)),           # f_v.b
            pl.BlockSpec((H, out_pad), lambda i: (0, 0)),     # fused head W^T
            pl.BlockSpec((1, out_pad), lambda i: (0, 0)),     # fused head bias
        ],
        out_specs=pl.BlockSpec((tb, out_pad), lambda i: (i, 0)),
        compiler_params=pltpu.CompilerParams(
            dimension_semantics=("parallel",)),
    )(states_flat, fwT, fb2, headT, headb)

    # Split the packed output back into (|w|, b).
    w_abs = out[:, :A].reshape(B, A, 1)
    b_out = out[:, A:A + 1].reshape(B, 1, 1)
    return w_abs, b_out


def init_params(key, num_state, num_action, num_agent, num_hidden):
    """Deterministic PyTorch-Linear-style init (uniform +/- 1/sqrt(fan_in))."""
    state_shape = num_state * num_agent
    ks = jax.random.split(key, 6)

    def linear(kw, kb, out_dim, in_dim):
        bound = 1.0 / jnp.sqrt(in_dim)
        w = jax.random.uniform(kw, (out_dim, in_dim), jnp.float32, -bound, bound)
        b = jax.random.uniform(kb, (out_dim,), jnp.float32, -bound, bound)
        return w, b

    f_v_w, f_v_b = linear(ks[0], ks[1], num_hidden, state_shape)
    w_v_w, w_v_b = linear(ks[2], ks[3], num_agent, num_hidden)
    b_v_w, b_v_b = linear(ks[4], ks[5], 1, num_hidden)
    return {
        "f_v_w": f_v_w, "f_v_b": f_v_b,
        "w_v_w": w_v_w, "w_v_b": w_v_b,
        "b_v_w": b_v_w, "b_v_b": b_v_b,
    }


def _reference(states, p):
    """Pure-JAX reference mirroring the PyTorch forward."""
    B, A, S = states.shape
    s = states.reshape(B, A * S)
    x = s @ p["f_v_w"].T + p["f_v_b"]
    h = jnp.maximum(x, 0.0)
    w = (h @ p["w_v_w"].T + p["w_v_b"]).reshape(B, A, 1)
    b = (h @ p["b_v_w"].T + p["b_v_b"]).reshape(B, 1, 1)
    return jnp.abs(w), b


if __name__ == "__main__":
    num_state, num_action, num_agent, num_hidden = 4, 3, 4, 32
    batch = 2

    key = jax.random.PRNGKey(0)
    k_params, k_states = jax.random.split(key)
    params = init_params(k_params, num_state, num_action, num_agent, num_hidden)
    states = jax.random.normal(k_states, (batch, num_agent, num_state), jnp.float32)

    w_abs, b = mixnet_forward(states, params)
    jax.block_until_ready((w_abs, b))

    w_ref, b_ref = _reference(states, params)
    assert w_abs.shape == (batch, num_agent, 1)
    assert b.shape == (batch, 1, 1)
    assert jnp.allclose(w_abs, w_ref, atol=1e-5), "w mismatch vs reference"
    assert jnp.allclose(b, b_ref, atol=1e-5), "b mismatch vs reference"

    print("KERNEL_OK")
</pallas_src>

<mosaic_0001>
module attributes {stable_mosaic.version = 11 : i64} {
  func.func @_mixnet_kernel(%arg0: i32, %arg1: memref<8x16xf32, #tpu.memory_space<vmem>>, %arg2: memref<16x32xf32, #tpu.memory_space<vmem>>, %arg3: memref<1x32xf32, #tpu.memory_space<vmem>>, %arg4: memref<32x8xf32, #tpu.memory_space<vmem>>, %arg5: memref<1x8xf32, #tpu.memory_space<vmem>>, %arg6: memref<8x8xf32, #tpu.memory_space<vmem>>) attributes {dimension_semantics = [#tpu.dimension_semantics<parallel>], iteration_bounds = array<i64: 1>, scalar_prefetch = 0 : i64, scratch_operands = 0 : i64, tpu.core_type = #tpu.core_type<tc>, window_params = [{transform_indices = @transform_0, window_bounds = array<i64: 8, 16>}, {pipeline_mode = #tpu.pipeline_mode<synchronous>, transform_indices = @transform_1, window_bounds = array<i64: 16, 32>}, {pipeline_mode = #tpu.pipeline_mode<synchronous>, transform_indices = @transform_2, window_bounds = array<i64: 1, 32>}, {pipeline_mode = #tpu.pipeline_mode<synchronous>, transform_indices = @transform_3, window_bounds = array<i64: 32, 8>}, {pipeline_mode = #tpu.pipeline_mode<synchronous>, transform_indices = @transform_4, window_bounds = array<i64: 1, 8>}, {transform_indices = @transform_5, window_bounds = array<i64: 8, 8>}]} {
    %c0 = arith.constant 0 : index
    %c0_0 = arith.constant 0 : index
    %0 = vector.load %arg1[%c0, %c0_0] : memref<8x16xf32, #tpu.memory_space<vmem>>, vector<8x16xf32>
    %c0_1 = arith.constant 0 : index
    %c0_2 = arith.constant 0 : index
    %1 = vector.load %arg2[%c0_1, %c0_2] : memref<16x32xf32, #tpu.memory_space<vmem>>, vector<16x32xf32>
    %cst = arith.constant dense<0.000000e+00> : vector<8x32xf32>
    %2 = tpu.matmul %0, %1, %cst {dimension_numbers = #tpu.dot_dimension_numbers<[1], [0], [0], [1], [0, 0, 1, 1], [], []>} : vector<8x16xf32>, vector<16x32xf32>, vector<8x32xf32> -> vector<8x32xf32>
    %c0_3 = arith.constant 0 : index
    %c0_4 = arith.constant 0 : index
    %3 = vector.load %arg3[%c0_3, %c0_4] : memref<1x32xf32, #tpu.memory_space<vmem>>, vector<1x32xf32>
    %4 = vector.broadcast %3 : vector<1x32xf32> to vector<8x32xf32>
    %5 = arith.addf %2, %4 : vector<8x32xf32>
    %cst_5 = arith.constant 0.000000e+00 : f32
    %6 = vector.broadcast %cst_5 : f32 to vector<8x32xf32>
    %7 = arith.maximumf %5, %6 : vector<8x32xf32>
    %c0_6 = arith.constant 0 : index
    %c0_7 = arith.constant 0 : index
    %8 = vector.load %arg4[%c0_6, %c0_7] : memref<32x8xf32, #tpu.memory_space<vmem>>, vector<32x8xf32>
    %cst_8 = arith.constant dense<0.000000e+00> : vector<8x8xf32>
    %9 = tpu.matmul %7, %8, %cst_8 {dimension_numbers = #tpu.dot_dimension_numbers<[1], [0], [0], [1], [0, 0, 1, 1], [], []>} : vector<8x32xf32>, vector<32x8xf32>, vector<8x8xf32> -> vector<8x8xf32>
    %c0_9 = arith.constant 0 : index
    %c0_10 = arith.constant 0 : index
    %10 = vector.load %arg5[%c0_9, %c0_10] : memref<1x8xf32, #tpu.memory_space<vmem>>, vector<1x8xf32>
    %11 = vector.broadcast %10 : vector<1x8xf32> to vector<8x8xf32>
    %12 = arith.addf %9, %11 : vector<8x8xf32>
    %13 = tpu.iota {dimensions = array<i32: 1>} : vector<1x8xi32>
    %c4_i32 = arith.constant 4 : i32
    %14 = vector.broadcast %c4_i32 : i32 to vector<1x8xi32>
    %15 = arith.cmpi slt, %13, %14 : vector<1x8xi32>
    %16 = math.absf %12 : vector<8x8xf32>
    %17 = vector.shape_cast %15 : vector<1x8xi1> to vector<1x8xi1>
    %18 = vector.broadcast %17 : vector<1x8xi1> to vector<8x8xi1>
    %19 = arith.select %18, %16, %12 : vector<8x8xi1>, vector<8x8xf32>
    %c0_11 = arith.constant 0 : index
    %c0_12 = arith.constant 0 : index
    %20 = vector.load %arg6[%c0_11, %c0_12] : memref<8x8xf32, #tpu.memory_space<vmem>>, vector<8x8xf32>
    tpu.vector_store %arg6[%c0_11, %c0_12], %19 {strides = array<i32>} : memref<8x8xf32, #tpu.memory_space<vmem>>, vector<8x8xf32>,
    return
  }
  func.func @transform_0(%arg0: i32) -> (i32, i32) {
    %c0_i32 = arith.constant 0 : i32
    %c0_i32_0 = arith.constant 0 : i32
    return %arg0, %c0_i32 : i32, i32
  }
  func.func @transform_1(%arg0: i32) -> (i32, i32) {
    %c0_i32 = arith.constant 0 : i32
    %c0_i32_0 = arith.constant 0 : i32
    %c0_i32_1 = arith.constant 0 : i32
    return %c0_i32, %c0_i32_0 : i32, i32
  }
  func.func @transform_2(%arg0: i32) -> (i32, i32) {
    %c0_i32 = arith.constant 0 : i32
    %c0_i32_0 = arith.constant 0 : i32
    %c0_i32_1 = arith.constant 0 : i32
    return %c0_i32, %c0_i32_0 : i32, i32
  }
  func.func @transform_3(%arg0: i32) -> (i32, i32) {
    %c0_i32 = arith.constant 0 : i32
    %c0_i32_0 = arith.constant 0 : i32
    %c0_i32_1 = arith.constant 0 : i32
    return %c0_i32, %c0_i32_0 : i32, i32
  }
  func.func @transform_4(%arg0: i32) -> (i32, i32) {
    %c0_i32 = arith.constant 0 : i32
    %c0_i32_0 = arith.constant 0 : i32
    %c0_i32_1 = arith.constant 0 : i32
    return %c0_i32, %c0_i32_0 : i32, i32
  }
  func.func @transform_5(%arg0: i32) -> (i32, i32) {
    %c0_i32 = arith.constant 0 : i32
    %c0_i32_0 = arith.constant 0 : i32
    return %arg0, %c0_i32 : i32, i32
  }
}

</mosaic_0001>

<llo_original>
// kernel: tpu_custom_call.1
$region0: #{tpu_custom_call.1}
  #allocation0 [shape = 'u32[]', space=smem, size = 0x4, offset = 0x4, fixed_abs, tag = 'smem constant byte address 0x4 - core index']
  #allocation1 [shape = 'u32[144,128]{1,0:T(1,128)}', space=vmem, size = 0x12000, scoped, tag = 'internal scratch']
  %s0 = inlined_call_operand.vmem [shape: f32[2,16], index: 0, kind: input, shape index: {}]
  %s1 = inlined_call_operand.vmem [shape: f32[16,32], index: 1, kind: input, shape index: {}]
  %s2 = inlined_call_operand.vmem [shape: f32[1,32], index: 2, kind: input, shape index: {}]
  %s3 = inlined_call_operand.vmem [shape: f32[32,8], index: 3, kind: input, shape index: {}]
  %s4 = inlined_call_operand.vmem [shape: f32[1,8], index: 4, kind: input, shape index: {}]
  %s5 = inlined_call_operand.hbm [shape: f32[2,8], index: 5, kind: output, shape index: {}]
  %s6 = sld [smem:[#allocation0]]
  $region30: #{tpu_custom_call.1} parent=0
    _
  %s8 = ssub.s32 1, %s6
  %s9 = scalar_select 0, %s8, %s6
  $region1: #{tpu_custom_call.1} parent=0
    #allocation2 [shape = 'u8[4096]{0}', space=vmem, size = 0x1000, scoped, tag = 'output window, operand 0, single buffered']
    #allocation3 [shape = 's32[1]{0}', space=sflag, size = 0x4, scoped, tag = 'scoped memory for tpu_custom_call.1']
    %10 = vsyncpa [#allocation3], 0
    // Predicated region
    $region2: #{tpu_custom_call.1} parent=1 // pred_check
      _
    $region3: #{tpu_custom_call.1} parent=1 // pred_check_branch
      %12 = sbr.rel (0) target = $region5
    $region4: #{tpu_custom_call.1} parent=1 // pred_region
      _
    $region5: #{tpu_custom_call.1} parent=1 // pred_fallthru
      _
    // Predicated region
    $region6: #{tpu_custom_call.1} parent=1 // pred_check
      _
    $region7: #{tpu_custom_call.1} parent=1 // pred_check_branch
      %14 = sbr.rel (0) target = $region9
    $region8: #{tpu_custom_call.1} parent=1 // pred_region
      _
    $region9: #{tpu_custom_call.1} parent=1 // pred_fallthru
      _
    // Predicated region
    $region10: #{tpu_custom_call.1} parent=1 // pred_check
      _
    $region11: #{tpu_custom_call.1} parent=1 // pred_check_branch
      %16 = sbr.rel (0) target = $region13
    $region12: #{tpu_custom_call.1} parent=1 // pred_region
      _
    $region13: #{tpu_custom_call.1} parent=1 // pred_fallthru
      _
    // Predicated region
    $region14: #{tpu_custom_call.1} parent=1 // pred_check
      _
    $region15: #{tpu_custom_call.1} parent=1 // pred_check_branch
      %18 = sbr.rel (0) target = $region17
    $region16: #{tpu_custom_call.1} parent=1 // pred_region
      _
    $region17: #{tpu_custom_call.1} parent=1 // pred_fallthru
      _
    // Predicated region
    $region18: #{tpu_custom_call.1} parent=1 // pred_check
      _
    $region19: #{tpu_custom_call.1} parent=1 // pred_check_branch
      %20 = sbr.rel (0) target = $region21
    $region20: #{tpu_custom_call.1} parent=1 // pred_region
      _
    $region21: #{tpu_custom_call.1} parent=1 // pred_fallthru
      _
    %v21 = vld [vmem:[%s0] sm:$0xff]
    %v22 = vld [vmem:[%s1] sm:$0xff]
    %v23 = vld [vmem:[%s1 + $0x8] sm:$0xff]
    %v24 = vld [vmem:[%s2] sm:$0x1]
    %v26 = vlaneseq
    %v27 = vshrl.u32 %v26, 7
    %v28 = vsub.s32 0, %v27
    %v29 = vrot.slane %v24, %v28
    %vm31 = vcmask 130048
    %v33 = vsel %vm31, %v21, 0
    %35 = vmatprep.subr.mxu0 0.0
    %36 = vmatpush1.msra.mxu0 0.0
    %37 = vmatprep.subr.mxu0 0.0
    %38 = vmatpush1.msra.mxu0 0.0
    %39 = vmatprep.subr.mxu0 0.0
    %40 = vmatpush1.msra.mxu0 0.0
    %41 = vmatprep.subr.mxu0 0.0
    %42 = vmatpush1.msra.mxu0 0.0
    %43 = vmatprep.subr.mxu0 0.0
    %44 = vmatpush1.msra.mxu0 0.0
    %45 = vmatprep.subr.mxu0 0.0
    %46 = vmatpush1.msra.mxu0 0.0
    %47 = vmatprep.subr.mxu0 0.0
    %48 = vmatpush1.msra.mxu0 0.0
    %49 = vmatprep.subr.mxu0 0.0
    %50 = vmatpush1.msra.mxu0 0.0
    %51 = vmatprep.subr.mxu0 0.0
    %52 = vmatpush1.msra.mxu0 0.0
    %53 = vmatprep.subr.mxu0 0.0
    %54 = vmatpush1.msra.mxu0 0.0
    %55 = vmatprep.subr.mxu0 0.0
    %56 = vmatpush1.msra.mxu0 0.0
    %57 = vmatprep.subr.mxu0 0.0
    %58 = vmatpush1.msra.mxu0 0.0
    %59 = vmatprep.subr.mxu0 0.0
    %60 = vmatpush1.msra.mxu0 0.0
    %61 = vmatprep.subr.mxu0 0.0
    %62 = vmatpush1.msra.mxu0 0.0
    %63 = vmatprep.subr.mxu0 0.0
    %64 = vmatpush1.msra.mxu0 %v23
    %65 = vmatprep.subr.mxu0 0.0
    %66 = vmatpush1.msra.mxu0 %v22
    %67 = vmatprep.subr.mxu0 0.0
    %68 = vmatpush2.msra.mxu0 0.0
    %69 = vmatprep.subr.mxu0 0.0
    %70 = vmatpush2.msra.mxu0 0.0
    %71 = vmatprep.subr.mxu0 0.0
    %72 = vmatpush2.msra.mxu0 0.0
    %73 = vmatprep.subr.mxu0 0.0
    %74 = vmatpush2.msra.mxu0 0.0
    %75 = vmatprep.subr.mxu0 0.0
    %76 = vmatpush2.msra.mxu0 0.0
    %77 = vmatprep.subr.mxu0 0.0
    %78 = vmatpush2.msra.mxu0 0.0
    %79 = vmatprep.subr.mxu0 0.0
    %80 = vmatpush2.msra.mxu0 0.0
    %81 = vmatprep.subr.mxu0 0.0
    %82 = vmatpush2.msra.mxu0 0.0
    %83 = vmatprep.subr.mxu0 0.0
    %84 = vmatpush2.msra.mxu0 0.0
    %85 = vmatprep.subr.mxu0 0.0
    %86 = vmatpush2.msra.mxu0 0.0
    %87 = vmatprep.subr.mxu0 0.0
    %88 = vmatpush2.msra.mxu0 0.0
    %89 = vmatprep.subr.mxu0 0.0
    %90 = vmatpush2.msra.mxu0 0.0
    %91 = vmatprep.subr.mxu0 0.0
    %92 = vmatpush2.msra.mxu0 0.0
    %93 = vmatprep.subr.mxu0 0.0
    %94 = vmatpush2.msra.mxu0 0.0
    %95 = vmatprep.subr.mxu0 0.0
    %96 = vmatpush2.msra.mxu0 0.0
    %97 = vmatprep.subr.mxu0 0.0
    %98 = vmatpush2.msra.mxu0 0.0
    %99 = vmatprep.mubr.f32.mxu0 0.0
    %100 = vmatmul.mubr.f32.gmra.mxu0 %v33
    %v101 = vpop.f32.mrf.mxu0
    %v102 = vadd.f32 %v29, %v101
    %v103 = vpop.f32.mrf.mxu0
    %104 = vdwg.mxu0
    %v105 = vmax.f32 %v102, 0.0
    %v106 = vld [vmem:[%s3] sm:$0xff]
    %v107 = vld [vmem:[%s3 + $0x8] sm:$0xff]
    %v108 = vld [vmem:[%s3 + $0x10] sm:$0xff]
    %v109 = vld [vmem:[%s3 + $0x18] sm:$0xff]
    %v110 = vld [vmem:[%s4] sm:$0x1]
    %v112 = vlaneseq
    %v113 = vshrl.u32 %v112, 7
    %v114 = vsub.s32 0, %v113
    %v115 = vrot.slane %v110, %v114
    %vm117 = vcmask 261120
    %v119 = vsel %vm117, %v105, 0
    %121 = vmatprep.subr.mxu0 0.0
    %122 = vmatpush1.msra.mxu0 0.0
    %123 = vmatprep.subr.mxu0 0.0
    %124 = vmatpush1.msra.mxu0 0.0
    %125 = vmatprep.subr.mxu0 0.0
    %126 = vmatpush1.msra.mxu0 0.0
    %127 = vmatprep.subr.mxu0 0.0
    %128 = vmatpush1.msra.mxu0 0.0
    %129 = vmatprep.subr.mxu0 0.0
    %130 = vmatpush1.msra.mxu0 0.0
    %131 = vmatprep.subr.mxu0 0.0
    %132 = vmatpush1.msra.mxu0 0.0
    %133 = vmatprep.subr.mxu0 0.0
    %134 = vmatpush1.msra.mxu0 0.0
    %135 = vmatprep.subr.mxu0 0.0
    %136 = vmatpush1.msra.mxu0 0.0
    %137 = vmatprep.subr.mxu0 0.0
    %138 = vmatpush1.msra.mxu0 0.0
    %139 = vmatprep.subr.mxu0 0.0
    %140 = vmatpush1.msra.mxu0 0.0
    %141 = vmatprep.subr.mxu0 0.0
    %142 = vmatpush1.msra.mxu0 0.0
    %143 = vmatprep.subr.mxu0 0.0
    %144 = vmatpush1.msra.mxu0 0.0
    %145 = vmatprep.subr.mxu0 0.0
    %146 = vmatpush1.msra.mxu0 %v109
    %147 = vmatprep.subr.mxu0 0.0
    %148 = vmatpush1.msra.mxu0 %v108
    %149 = vmatprep.subr.mxu0 0.0
    %150 = vmatpush1.msra.mxu0 %v107
    %151 = vmatprep.subr.mxu0 0.0
    %152 = vmatpush1.msra.mxu0 %v106
    %153 = vmatprep.subr.mxu0 0.0
    %154 = vmatpush2.msra.mxu0 0.0
    %155 = vmatprep.subr.mxu0 0.0
    %156 = vmatpush2.msra.mxu0 0.0
    %157 = vmatprep.subr.mxu0 0.0
    %158 = vmatpush2.msra.mxu0 0.0
    %159 = vmatprep.subr.mxu0 0.0
    %160 = vmatpush2.msra.mxu0 0.0
    %161 = vmatprep.subr.mxu0 0.0
    %162 = vmatpush2.msra.mxu0 0.0
    %163 = vmatprep.subr.mxu0 0.0
    %164 = vmatpush2.msra.mxu0 0.0
    %165 = vmatprep.subr.mxu0 0.0
    %166 = vmatpush2.msra.mxu0 0.0
    %167 = vmatprep.subr.mxu0 0.0
    %168 = vmatpush2.msra.mxu0 0.0
    %169 = vmatprep.subr.mxu0 0.0
    %170 = vmatpush2.msra.mxu0 0.0
    %171 = vmatprep.subr.mxu0 0.0
    %172 = vmatpush2.msra.mxu0 0.0
    %173 = vmatprep.subr.mxu0 0.0
    %174 = vmatpush2.msra.mxu0 0.0
    %175 = vmatprep.subr.mxu0 0.0
    %176 = vmatpush2.msra.mxu0 0.0
    %177 = vmatprep.subr.mxu0 0.0
    %178 = vmatpush2.msra.mxu0 0.0
    %179 = vmatprep.subr.mxu0 0.0
    %180 = vmatpush2.msra.mxu0 0.0
    %181 = vmatprep.subr.mxu0 0.0
    %182 = vmatpush2.msra.mxu0 0.0
    %183 = vmatprep.subr.mxu0 0.0
    %184 = vmatpush2.msra.mxu0 0.0
    %185 = vmatprep.mubr.f32.mxu0 0.0
    %186 = vmatmul.mubr.f32.gmra.mxu0 %v119
    %v187 = vpop.f32.mrf.mxu0
    %v188 = vadd.f32 %v115, %v187
    %v189 = vpop.f32.mrf.mxu0
    %190 = vdwg.mxu0
    %v191 = vlaneseq
    %v192 = vand.u32 %v191, 127
    %vm193 = vcmp.lt.s32.totalorder %v192, 4
    %v194 = vand.u32 2147483647, %v188
    %v195 = vsel %vm193, 1, 0
    %vm196 = vcmp.eq.s32.totalorder %v195, 1
    %v197 = vsel %vm196, %v194, %v188
    %vm198 = vcmask 64512
    %199 = vst.msk [vmem:[#allocation2] sm:$0xff] %vm198, %v197
    // Predicated region
    $region22: #{tpu_custom_call.1} parent=1 // pred_check
      _
    $region23: #{tpu_custom_call.1} parent=1 // pred_check_branch
      %201 = sbr.rel (0) target = $region25
    $region24: #{tpu_custom_call.1} parent=1 // pred_region
      %s203 = ssub.s32 128, 32
      %204 = vsyncadd [#allocation3], %s203
      %s205 = sshll.u32 [#allocation2], 4
      %s206 = int_to_ptr.vmem [resolvable:$true] %s205
      %211 = dma.vmem_to_hbm [thread:$0]  %s206, 32, %s5, [#allocation3], 32, 32, 2
    $region25: #{tpu_custom_call.1} parent=1 // pred_fallthru
      _
    // Predicated region
    $region26: #{tpu_custom_call.1} parent=1 // pred_check
      _
    $region27: #{tpu_custom_call.1} parent=1 // pred_check_branch
      %213 = sbr.rel (0) target = $region29
    $region28: #{tpu_custom_call.1} parent=1 // pred_region
      %214 = dma.done [#allocation3], 128
    $region29: #{tpu_custom_call.1} parent=1 // pred_fallthru
      _
    %215 = vsyncpa [#allocation3], 1

</llo_original>
